<compile_context>
chip_gen: v7x
topology: tpu7x:2x2x1
jax: 0.10.0
libtpu: 0.0.40
codegen_flags: <defaults>
</compile_context>

<pallas_src>
import jax
import jax.numpy as jnp
import numpy as np
from jax import lax
from jax.experimental import pallas as pl
from jax.experimental.pallas import tpu as pltpu


def _attn_kernel(src_ref, mem_ref, pm_ref, mask_ref,
                 w_in_t_ref, w_out_c_t_ref, w_out_q_t_ref,
                 attn_h_ref, align_ref, nore_ref):
    BB, TT, D = src_ref.shape
    S = mem_ref.shape[1]

    q3 = src_ref[...]                      # (BB, TT, D) bf16
    h3 = mem_ref[...]                      # (BB, S, D)  bf16
    pm = pm_ref[...]                       # (BB, 1, S)  f32  (probs * mask, pre-folded)
    m = mask_ref[...]                      # (BB, 1, S)  f32

    # score (general): (q @ W_in^T) @ H^T  -- batched, no explicit transpose of H.
    q2 = q3.reshape(BB * TT, D)
    qw2 = jnp.dot(q2, w_in_t_ref[...], preferred_element_type=jnp.float32)     # (BB*TT, D) f32
    qw3 = qw2.astype(jnp.bfloat16).reshape(BB, TT, D)
    scores = lax.dot_general(qw3, h3,
                             dimension_numbers=(((2,), (2,)), ((0,), (0,))),
                             preferred_element_type=jnp.float32)               # (BB, TT, S) f32

    # masked_fill_(1 - mask, -inf)   (NaN for fully-masked rows, matching PyTorch)
    scores = jnp.where(m > 0.0, scores, -jnp.inf)

    # softmax over src dim -> norescale_align_vectors (f32, EUP reciprocal)
    smax = jnp.max(scores, axis=-1, keepdims=True)
    e = jnp.exp(scores - smax)
    nore = e * pl.reciprocal(jnp.sum(e, axis=-1, keepdims=True), approx=True)  # (BB, TT, S)

    # rescale by key probabilities (mask already folded into pm), renormalize
    scaled = nore * pm
    align = scaled * pl.reciprocal(jnp.sum(scaled, axis=-1, keepdims=True), approx=True)

    # context c = align @ H  (batched)
    c3 = lax.dot_general(align.astype(jnp.bfloat16), h3,
                         dimension_numbers=(((2,), (1,)), ((0,), (0,))),
                         preferred_element_type=jnp.float32)                   # (BB, TT, D) f32

    # linear_out([c, q]) = c @ Wc^T + q @ Wq^T, then tanh
    c2 = c3.astype(jnp.bfloat16).reshape(BB * TT, D)
    out2 = (jnp.dot(c2, w_out_c_t_ref[...], preferred_element_type=jnp.float32)
            + jnp.dot(q2, w_out_q_t_ref[...], preferred_element_type=jnp.float32))

    attn_h_ref[...] = jnp.tanh(out2).reshape(BB, TT, D).astype(attn_h_ref.dtype)
    align_ref[...] = align.astype(align_ref.dtype)
    nore_ref[...] = nore.astype(nore_ref.dtype)


def _choose_blocks(B, T, S, D, budget_bytes=2 * 1024 * 1024):
    """Pick (BB, TT) so each grid step moves a few MiB at most (VMEM-safe on
    v7x's 64 MiB with default double-buffering) while amortizing per-step cost."""
    # T tile: full T unless very long; keep a sublane-friendly divisor when tiling.
    if T <= 512:
        TT = T
    else:
        TT = T
        for d in range(512, 7, -1):
            if T % d == 0 and d % 8 == 0:
                TT = d
                break
    # bytes moved per batch element per step (bf16 activations in, f32 outputs)
    per_b = (TT * D * 2 + S * D * 2 + 2 * S * 4 + TT * D * 4 + 2 * TT * S * 4)
    BB = 1
    for d in range(min(B, 128), 0, -1):
        if B % d == 0 and d * per_b <= budget_bytes:
            BB = d
            break
    return BB, TT


def my_global_attention(source, memory_bank, probs, w_in, w_out,
                        memory_lengths=None):
    """Pallas implementation of MyGlobalAttention.forward (attn_type='general',
    default flags). Returns (attn_h, align_vectors, norescale_align_vectors)
    with PyTorch axis conventions."""
    one_step = source.ndim == 2
    if one_step:
        source = source[:, None, :]
    B, T, D = source.shape
    _, S, _ = memory_bank.shape

    # mask: [B, 1, S]; all ones when memory_lengths is None (identical semantics).
    if memory_lengths is None:
        mask = jnp.ones((B, 1, S), jnp.float32)
    else:
        mask = (jnp.arange(S)[None, :] < memory_lengths[:, None]).astype(jnp.float32)
        mask = mask[:, None, :]
    # fold probs * mask once (the post-softmax re-mask multiply is then redundant)
    pm = probs.astype(jnp.float32)[:, None, :] * mask

    bf16 = jnp.bfloat16
    src_b = source.astype(bf16)
    mem_b = memory_bank.astype(bf16)
    # pre-transpose weights so kernel does x @ W
    w_in_t = w_in.T.astype(bf16)                # (D, D)
    w_out_c_t = w_out[:, :D].T.astype(bf16)     # (D, D)
    w_out_q_t = w_out[:, D:].T.astype(bf16)     # (D, D)

    BB, TT = _choose_blocks(B, T, S, D)
    grid = (B // BB, T // TT)

    out_shapes = (
        jax.ShapeDtypeStruct((B, T, D), jnp.float32),
        jax.ShapeDtypeStruct((B, T, S), jnp.float32),
        jax.ShapeDtypeStruct((B, T, S), jnp.float32),
    )

    attn_h, align, nore = pl.pallas_call(
        _attn_kernel,
        out_shape=out_shapes,
        grid=grid,
        in_specs=[
            pl.BlockSpec((BB, TT, D), lambda b, t: (b, t, 0)),
            pl.BlockSpec((BB, S, D), lambda b, t: (b, 0, 0)),
            pl.BlockSpec((BB, 1, S), lambda b, t: (b, 0, 0)),
            pl.BlockSpec((BB, 1, S), lambda b, t: (b, 0, 0)),
            pl.BlockSpec((D, D), lambda b, t: (0, 0)),
            pl.BlockSpec((D, D), lambda b, t: (0, 0)),
            pl.BlockSpec((D, D), lambda b, t: (0, 0)),
        ],
        out_specs=[
            pl.BlockSpec((BB, TT, D), lambda b, t: (b, t, 0)),
            pl.BlockSpec((BB, TT, S), lambda b, t: (b, t, 0)),
            pl.BlockSpec((BB, TT, S), lambda b, t: (b, t, 0)),
        ],
        compiler_params=pltpu.CompilerParams(
            dimension_semantics=("parallel", "parallel")),
    )(src_b, mem_b, pm, mask, w_in_t, w_out_c_t, w_out_q_t)

    if one_step:
        return attn_h[:, 0, :], align[:, 0, :], nore[:, 0, :]
    # PyTorch convention: [tgt_len, batch, ...]
    return (jnp.transpose(attn_h, (1, 0, 2)),
            jnp.transpose(align, (1, 0, 2)),
            jnp.transpose(nore, (1, 0, 2)))


def _reference(source, memory_bank, probs, w_in, w_out, memory_lengths):
    """Pure-JAX reference of the same forward path with the same bf16-matmul /
    f32-accumulate mixed precision as the kernel."""
    B, T, D = source.shape
    S = memory_bank.shape[1]
    bf16 = jnp.bfloat16
    src_b = source.astype(bf16)
    mem_b = memory_bank.astype(bf16)
    w_in_t = w_in.T.astype(bf16)
    w_oc = w_out[:, :D].T.astype(bf16)
    w_oq = w_out[:, D:].T.astype(bf16)

    mask = (jnp.arange(S)[None, :] < memory_lengths[:, None]).astype(jnp.float32)[:, None, :]
    qw = jnp.einsum('btd,de->bte', src_b, w_in_t,
                    preferred_element_type=jnp.float32).astype(bf16)
    scores = jnp.einsum('bte,bse->bts', qw, mem_b,
                        preferred_element_type=jnp.float32)
    scores = jnp.where(mask > 0, scores, -jnp.inf)
    nore = jax.nn.softmax(scores, axis=-1)
    scaled = nore * (probs[:, None, :] * mask)
    av = scaled / jnp.sum(scaled, axis=-1, keepdims=True)
    c = jnp.einsum('bts,bsd->btd', av.astype(bf16), mem_b,
                   preferred_element_type=jnp.float32)
    out = (jnp.einsum('btd,de->bte', c.astype(bf16), w_oc,
                      preferred_element_type=jnp.float32)
           + jnp.einsum('btd,de->bte', src_b, w_oq,
                        preferred_element_type=jnp.float32))
    attn_h = jnp.tanh(out)
    return (jnp.transpose(attn_h, (1, 0, 2)),
            jnp.transpose(av, (1, 0, 2)),
            jnp.transpose(nore, (1, 0, 2)))


if __name__ == "__main__":
    B, T, S, D = 2, 4, 8, 32
    key = jax.random.PRNGKey(0)
    k1, k2, k3, k4, k5 = jax.random.split(key, 5)

    source = jax.random.normal(k1, (B, T, D), jnp.float32)
    memory_bank = jax.random.normal(k2, (B, S, D), jnp.float32)
    probs = jax.nn.sigmoid(jax.random.normal(k3, (B, S), jnp.float32))
    # deterministic parameter init (Linear weight shapes: [out, in])
    w_in = jax.random.normal(k4, (D, D), jnp.float32) * 0.1       # linear_in.weight
    w_out = jax.random.normal(k5, (D, 2 * D), jnp.float32) * 0.1  # linear_out.weight (no bias)
    memory_lengths = jnp.array([S, S - 2], dtype=jnp.int32)

    attn_h, align, nore = my_global_attention(
        source, memory_bank, probs, w_in, w_out, memory_lengths)
    jax.block_until_ready((attn_h, align, nore))

    ref_h, ref_a, ref_n = _reference(source, memory_bank, probs, w_in, w_out,
                                     memory_lengths)
    # bf16 matmuls + approx reciprocal -> relaxed tolerance vs. the f32-exact test
    np.testing.assert_allclose(np.asarray(attn_h), np.asarray(ref_h), rtol=2e-2, atol=2e-2)
    np.testing.assert_allclose(np.asarray(align), np.asarray(ref_a), rtol=2e-2, atol=2e-2)
    np.testing.assert_allclose(np.asarray(nore), np.asarray(ref_n), rtol=2e-2, atol=2e-2)

    print("KERNEL_OK")
</pallas_src>

<mosaic_0001>
module attributes {stable_mosaic.version = 11 : i64} {
  func.func @_attn_kernel(%arg0: i32, %arg1: i32, %arg2: memref<2x4x32xbf16, #tpu.memory_space<vmem>>, %arg3: memref<2x8x32xbf16, #tpu.memory_space<vmem>>, %arg4: memref<2x1x8xf32, #tpu.memory_space<vmem>>, %arg5: memref<2x1x8xf32, #tpu.memory_space<vmem>>, %arg6: memref<32x32xbf16, #tpu.memory_space<vmem>>, %arg7: memref<32x32xbf16, #tpu.memory_space<vmem>>, %arg8: memref<32x32xbf16, #tpu.memory_space<vmem>>, %arg9: memref<2x4x32xf32, #tpu.memory_space<vmem>>, %arg10: memref<2x4x8xf32, #tpu.memory_space<vmem>>, %arg11: memref<2x4x8xf32, #tpu.memory_space<vmem>>) attributes {dimension_semantics = [#tpu.dimension_semantics<parallel>, #tpu.dimension_semantics<parallel>], iteration_bounds = array<i64: 1, 1>, scalar_prefetch = 0 : i64, scratch_operands = 0 : i64, tpu.core_type = #tpu.core_type<tc>, window_params = [{transform_indices = @transform_0, window_bounds = array<i64: 2, 4, 32>}, {transform_indices = @transform_1, window_bounds = array<i64: 2, 8, 32>}, {transform_indices = @transform_2, window_bounds = array<i64: 2, 1, 8>}, {transform_indices = @transform_3, window_bounds = array<i64: 2, 1, 8>}, {pipeline_mode = #tpu.pipeline_mode<synchronous>, transform_indices = @transform_4, window_bounds = array<i64: 32, 32>}, {pipeline_mode = #tpu.pipeline_mode<synchronous>, transform_indices = @transform_5, window_bounds = array<i64: 32, 32>}, {pipeline_mode = #tpu.pipeline_mode<synchronous>, transform_indices = @transform_6, window_bounds = array<i64: 32, 32>}, {transform_indices = @transform_7, window_bounds = array<i64: 2, 4, 32>}, {transform_indices = @transform_8, window_bounds = array<i64: 2, 4, 8>}, {transform_indices = @transform_9, window_bounds = array<i64: 2, 4, 8>}]} {
    %c0 = arith.constant 0 : index
    %c0_0 = arith.constant 0 : index
    %c0_1 = arith.constant 0 : index
    %0 = vector.load %arg2[%c0, %c0_0, %c0_1] : memref<2x4x32xbf16, #tpu.memory_space<vmem>>, vector<2x4x32xbf16>
    %c0_2 = arith.constant 0 : index
    %c0_3 = arith.constant 0 : index
    %c0_4 = arith.constant 0 : index
    %1 = vector.load %arg3[%c0_2, %c0_3, %c0_4] : memref<2x8x32xbf16, #tpu.memory_space<vmem>>, vector<2x8x32xbf16>
    %c0_5 = arith.constant 0 : index
    %c0_6 = arith.constant 0 : index
    %c0_7 = arith.constant 0 : index
    %2 = vector.load %arg4[%c0_5, %c0_6, %c0_7] : memref<2x1x8xf32, #tpu.memory_space<vmem>>, vector<2x1x8xf32>
    %c0_8 = arith.constant 0 : index
    %c0_9 = arith.constant 0 : index
    %c0_10 = arith.constant 0 : index
    %3 = vector.load %arg5[%c0_8, %c0_9, %c0_10] : memref<2x1x8xf32, #tpu.memory_space<vmem>>, vector<2x1x8xf32>
    %4 = vector.shape_cast %0 : vector<2x4x32xbf16> to vector<8x32xbf16>
    %c0_11 = arith.constant 0 : index
    %c0_12 = arith.constant 0 : index
    %5 = vector.load %arg6[%c0_11, %c0_12] : memref<32x32xbf16, #tpu.memory_space<vmem>>, vector<32x32xbf16>
    %cst = arith.constant dense<0.000000e+00> : vector<8x32xf32>
    %6 = tpu.matmul %4, %5, %cst {dimension_numbers = #tpu.dot_dimension_numbers<[1], [0], [0], [1], [0, 0, 1, 1], [], []>} : vector<8x32xbf16>, vector<32x32xbf16>, vector<8x32xf32> -> vector<8x32xf32>
    %7 = arith.truncf %6 : vector<8x32xf32> to vector<8x32xbf16>
    %8 = vector.shape_cast %7 : vector<8x32xbf16> to vector<2x4x32xbf16>
    %cst_13 = arith.constant dense<0.000000e+00> : vector<2x4x8xf32>
    %9 = tpu.matmul %8, %1, %cst_13 {dimension_numbers = #tpu.dot_dimension_numbers<[2], [2], [1], [1], [0, 0, 0, 1, 1, 1], [0], [0]>} : vector<2x4x32xbf16>, vector<2x8x32xbf16>, vector<2x4x8xf32> -> vector<2x4x8xf32>
    %cst_14 = arith.constant 0.000000e+00 : f32
    %10 = vector.broadcast %cst_14 : f32 to vector<2x1x8xf32>
    %11 = arith.cmpf ogt, %3, %10 : vector<2x1x8xf32>
    %cst_15 = arith.constant 0xFF800000 : f32
    %12 = vector.shape_cast %11 : vector<2x1x8xi1> to vector<2x1x8xi1>
    %13 = vector.broadcast %12 : vector<2x1x8xi1> to vector<2x4x8xi1>
    %14 = vector.broadcast %cst_15 : f32 to vector<2x4x8xf32>
    %15 = arith.select %13, %9, %14 : vector<2x4x8xi1>, vector<2x4x8xf32>
    %cst_16 = arith.constant dense<0xFF800000> : vector<2x4xf32>
    %16 = vector.multi_reduction <maximumf>, %15, %cst_16 [2] : vector<2x4x8xf32> to vector<2x4xf32>
    %17 = vector.shape_cast %16 : vector<2x4xf32> to vector<2x4x1xf32>
    %18 = vector.broadcast %17 : vector<2x4x1xf32> to vector<2x4x8xf32>
    %19 = arith.subf %15, %18 : vector<2x4x8xf32>
    %20 = math.exp %19 : vector<2x4x8xf32>
    %cst_17 = arith.constant dense<0.000000e+00> : vector<2x4xf32>
    %21 = vector.multi_reduction <add>, %20, %cst_17 [2] : vector<2x4x8xf32> to vector<2x4xf32>
    %22 = vector.shape_cast %21 : vector<2x4xf32> to vector<2x4x1xf32>
    %23 = tpu.reciprocal %22 {approx = true} : vector<2x4x1xf32> -> vector<2x4x1xf32>
    %24 = vector.broadcast %23 : vector<2x4x1xf32> to vector<2x4x8xf32>
    %25 = arith.mulf %20, %24 : vector<2x4x8xf32>
    %26 = vector.broadcast %2 : vector<2x1x8xf32> to vector<2x4x8xf32>
    %27 = arith.mulf %25, %26 : vector<2x4x8xf32>
    %cst_18 = arith.constant dense<0.000000e+00> : vector<2x4xf32>
    %28 = vector.multi_reduction <add>, %27, %cst_18 [2] : vector<2x4x8xf32> to vector<2x4xf32>
    %29 = vector.shape_cast %28 : vector<2x4xf32> to vector<2x4x1xf32>
    %30 = tpu.reciprocal %29 {approx = true} : vector<2x4x1xf32> -> vector<2x4x1xf32>
    %31 = vector.broadcast %30 : vector<2x4x1xf32> to vector<2x4x8xf32>
    %32 = arith.mulf %27, %31 : vector<2x4x8xf32>
    %33 = arith.truncf %32 : vector<2x4x8xf32> to vector<2x4x8xbf16>
    %cst_19 = arith.constant dense<0.000000e+00> : vector<2x4x32xf32>
    %34 = tpu.matmul %33, %1, %cst_19 {dimension_numbers = #tpu.dot_dimension_numbers<[2], [1], [1], [2], [0, 0, 0, 1, 1, 2], [0], [0]>} : vector<2x4x8xbf16>, vector<2x8x32xbf16>, vector<2x4x32xf32> -> vector<2x4x32xf32>
    %35 = arith.truncf %34 : vector<2x4x32xf32> to vector<2x4x32xbf16>
    %36 = vector.shape_cast %35 : vector<2x4x32xbf16> to vector<8x32xbf16>
    %c0_20 = arith.constant 0 : index
    %c0_21 = arith.constant 0 : index
    %37 = vector.load %arg7[%c0_20, %c0_21] : memref<32x32xbf16, #tpu.memory_space<vmem>>, vector<32x32xbf16>
    %cst_22 = arith.constant dense<0.000000e+00> : vector<8x32xf32>
    %38 = tpu.matmul %36, %37, %cst_22 {dimension_numbers = #tpu.dot_dimension_numbers<[1], [0], [0], [1], [0, 0, 1, 1], [], []>} : vector<8x32xbf16>, vector<32x32xbf16>, vector<8x32xf32> -> vector<8x32xf32>
    %c0_23 = arith.constant 0 : index
    %c0_24 = arith.constant 0 : index
    %39 = vector.load %arg8[%c0_23, %c0_24] : memref<32x32xbf16, #tpu.memory_space<vmem>>, vector<32x32xbf16>
    %cst_25 = arith.constant dense<0.000000e+00> : vector<8x32xf32>
    %40 = tpu.matmul %4, %39, %cst_25 {dimension_numbers = #tpu.dot_dimension_numbers<[1], [0], [0], [1], [0, 0, 1, 1], [], []>} : vector<8x32xbf16>, vector<32x32xbf16>, vector<8x32xf32> -> vector<8x32xf32>
    %41 = arith.addf %38, %40 : vector<8x32xf32>
    %42 = math.tanh %41 : vector<8x32xf32>
    %43 = vector.shape_cast %42 : vector<8x32xf32> to vector<2x4x32xf32>
    %c0_26 = arith.constant 0 : index
    %c0_27 = arith.constant 0 : index
    %c0_28 = arith.constant 0 : index
    %44 = vector.load %arg9[%c0_26, %c0_27, %c0_28] : memref<2x4x32xf32, #tpu.memory_space<vmem>>, vector<2x4x32xf32>
    tpu.vector_store %arg9[%c0_26, %c0_27, %c0_28], %43 {strides = array<i32>} : memref<2x4x32xf32, #tpu.memory_space<vmem>>, vector<2x4x32xf32>,
    %c0_29 = arith.constant 0 : index
    %c0_30 = arith.constant 0 : index
    %c0_31 = arith.constant 0 : index
    %45 = vector.load %arg10[%c0_29, %c0_30, %c0_31] : memref<2x4x8xf32, #tpu.memory_space<vmem>>, vector<2x4x8xf32>
    tpu.vector_store %arg10[%c0_29, %c0_30, %c0_31], %32 {strides = array<i32>} : memref<2x4x8xf32, #tpu.memory_space<vmem>>, vector<2x4x8xf32>,
    %c0_32 = arith.constant 0 : index
    %c0_33 = arith.constant 0 : index
    %c0_34 = arith.constant 0 : index
    %46 = vector.load %arg11[%c0_32, %c0_33, %c0_34] : memref<2x4x8xf32, #tpu.memory_space<vmem>>, vector<2x4x8xf32>
    tpu.vector_store %arg11[%c0_32, %c0_33, %c0_34], %25 {strides = array<i32>} : memref<2x4x8xf32, #tpu.memory_space<vmem>>, vector<2x4x8xf32>,
    return
  }
  func.func @transform_0(%arg0: i32, %arg1: i32) -> (i32, i32, i32) {
    %c0_i32 = arith.constant 0 : i32
    %c0_i32_0 = arith.constant 0 : i32
    return %arg0, %arg1, %c0_i32 : i32, i32, i32
  }
  func.func @transform_1(%arg0: i32, %arg1: i32) -> (i32, i32, i32) {
    %c0_i32 = arith.constant 0 : i32
    %c0_i32_0 = arith.constant 0 : i32
    %c0_i32_1 = arith.constant 0 : i32
    return %arg0, %c0_i32, %c0_i32_0 : i32, i32, i32
  }
  func.func @transform_2(%arg0: i32, %arg1: i32) -> (i32, i32, i32) {
    %c0_i32 = arith.constant 0 : i32
    %c0_i32_0 = arith.constant 0 : i32
    %c0_i32_1 = arith.constant 0 : i32
    return %arg0, %c0_i32, %c0_i32_0 : i32, i32, i32
  }
  func.func @transform_3(%arg0: i32, %arg1: i32) -> (i32, i32, i32) {
    %c0_i32 = arith.constant 0 : i32
    %c0_i32_0 = arith.constant 0 : i32
    %c0_i32_1 = arith.constant 0 : i32
    return %arg0, %c0_i32, %c0_i32_0 : i32, i32, i32
  }
  func.func @transform_4(%arg0: i32, %arg1: i32) -> (i32, i32) {
    %c0_i32 = arith.constant 0 : i32
    %c0_i32_0 = arith.constant 0 : i32
    %c0_i32_1 = arith.constant 0 : i32
    return %c0_i32, %c0_i32_0 : i32, i32
  }
  func.func @transform_5(%arg0: i32, %arg1: i32) -> (i32, i32) {
    %c0_i32 = arith.constant 0 : i32
    %c0_i32_0 = arith.constant 0 : i32
    %c0_i32_1 = arith.constant 0 : i32
    return %c0_i32, %c0_i32_0 : i32, i32
  }
  func.func @transform_6(%arg0: i32, %arg1: i32) -> (i32, i32) {
    %c0_i32 = arith.constant 0 : i32
    %c0_i32_0 = arith.constant 0 : i32
    %c0_i32_1 = arith.constant 0 : i32
    return %c0_i32, %c0_i32_0 : i32, i32
  }
  func.func @transform_7(%arg0: i32, %arg1: i32) -> (i32, i32, i32) {
    %c0_i32 = arith.constant 0 : i32
    %c0_i32_0 = arith.constant 0 : i32
    return %arg0, %arg1, %c0_i32 : i32, i32, i32
  }
  func.func @transform_8(%arg0: i32, %arg1: i32) -> (i32, i32, i32) {
    %c0_i32 = arith.constant 0 : i32
    %c0_i32_0 = arith.constant 0 : i32
    return %arg0, %arg1, %c0_i32 : i32, i32, i32
  }
  func.func @transform_9(%arg0: i32, %arg1: i32) -> (i32, i32, i32) {
    %c0_i32 = arith.constant 0 : i32
    %c0_i32_0 = arith.constant 0 : i32
    return %arg0, %arg1, %c0_i32 : i32, i32, i32
  }
}

</mosaic_0001>

<llo_original>
// kernel: tpu_custom_call.1
$region0: #{tpu_custom_call.1}
  #allocation0 [shape = 'u32[]', space=smem, size = 0x4, offset = 0x4, fixed_abs, tag = 'smem constant byte address 0x4 - core index']
  #allocation1 [shape = 'u32[144,128]{1,0:T(1,128)}', space=vmem, size = 0x12000, scoped, tag = 'internal scratch']
  %s0 = inlined_call_operand.hbm [shape: bf16[2,4,32], index: 0, kind: input, shape index: {}]
  %s1 = inlined_call_operand.hbm [shape: bf16[2,8,32], index: 1, kind: input, shape index: {}]
  %s2 = inlined_call_operand.vmem [shape: f32[2,1,8], index: 2, kind: input, shape index: {}]
  %s3 = inlined_call_operand.hbm [shape: f32[2,1,8], index: 3, kind: input, shape index: {}]
  %s4 = inlined_call_operand.hbm [shape: bf16[32,32], index: 4, kind: input, shape index: {}]
  %s5 = inlined_call_operand.vmem [shape: bf16[32,32], index: 5, kind: input, shape index: {}]
  %s6 = inlined_call_operand.hbm [shape: bf16[32,32], index: 6, kind: input, shape index: {}]
  %s7 = inlined_call_operand.hbm [shape: f32[2,4,32], index: 7, kind: output, shape index: {0}]
  %s8 = inlined_call_operand.hbm [shape: f32[2,4,8], index: 8, kind: output, shape index: {1}]
  %s9 = inlined_call_operand.hbm [shape: f32[2,4,8], index: 9, kind: output, shape index: {2}]
  %10 = xla_tuple %s7, %s8, %s9
  %s11 = sld [smem:[#allocation0]]
  $region74: #{tpu_custom_call.1} parent=0
    _
  %s13 = ssub.s32 1, %s11
  %s14 = scalar_select 0, %s13, %s11
  $region1: #{tpu_custom_call.1} parent=0
    #allocation2 [shape = 'u8[2048]{0}', space=vmem, size = 0x800, scoped, tag = 'input window, operand 0, single buffered']
    #allocation3 [shape = 's32[1]{0}', space=sflag, size = 0x4, scoped, tag = 'scoped memory for tpu_custom_call.1']
    #allocation4 [shape = 's32[1]{0}', space=sflag, size = 0x4, scoped, tag = 'scoped memory for tpu_custom_call.1']
    #allocation5 [shape = 'u8[4096]{0}', space=vmem, size = 0x1000, scoped, tag = 'input window, operand 1, single buffered']
    #allocation6 [shape = 's32[1]{0}', space=sflag, size = 0x4, scoped, tag = 'scoped memory for tpu_custom_call.1']
    #allocation7 [shape = 'u8[1024]{0}', space=vmem, size = 0x400, scoped, tag = 'input window, operand 3, single buffered']
    #allocation8 [shape = 'u8[8192]{0}', space=vmem, size = 0x2000, scoped, tag = 'input window, operand 4, single buffered']
    #allocation9 [shape = 's32[1]{0}', space=sflag, size = 0x4, scoped, tag = 'scoped memory for tpu_custom_call.1']
    #allocation10 [shape = 'u8[8192]{0}', space=vmem, size = 0x2000, scoped, tag = 'input window, operand 6, single buffered']
    #allocation11 [shape = 'u8[4096]{0}', space=vmem, size = 0x1000, scoped, tag = 'output window, operand 0, single buffered']
    #allocation12 [shape = 'u8[4096]{0}', space=vmem, size = 0x1000, scoped, tag = 'output window, operand 1, single buffered']
    #allocation13 [shape = 's32[1]{0}', space=sflag, size = 0x4, scoped, tag = 'scoped memory for tpu_custom_call.1']
    #allocation14 [shape = 'u8[4096]{0}', space=vmem, size = 0x1000, scoped, tag = 'output window, operand 2, single buffered']
    %15 = vsyncpa [#allocation3], 0
    %16 = vsyncpa [#allocation6], 0
    %17 = vsyncpa [#allocation9], 0
    %18 = vsyncpa [#allocation4], 0
    %19 = vsyncpa [#allocation13], 0
    // Predicated region
    $region2: #{tpu_custom_call.1} parent=1 // pred_check
      _
    $region3: #{tpu_custom_call.1} parent=1 // pred_check_branch
      %21 = sbr.rel (0) target = $region5
    $region4: #{tpu_custom_call.1} parent=1 // pred_region
      %s23 = ssub.s32 64, 64
      %24 = vsyncadd [#allocation3], %s23
      %s25 = sshll.u32 [#allocation2], 4
      %s26 = int_to_ptr.vmem [resolvable:$true] %s25
      %31 = dma.hbm_to_vmem [thread:$0]  %s0, 64, %s26, [#allocation3], 32, 32, 2
    $region5: #{tpu_custom_call.1} parent=1 // pred_fallthru
      _
    // Predicated region
    $region6: #{tpu_custom_call.1} parent=1 // pred_check
      _
    $region7: #{tpu_custom_call.1} parent=1 // pred_check_branch
      %33 = sbr.rel (0) target = $region9
    $region8: #{tpu_custom_call.1} parent=1 // pred_region
      %s35 = ssub.s32 128, 128
      %36 = vsyncadd [#allocation6], %s35
      %s37 = sshll.u32 [#allocation5], 4
      %s38 = int_to_ptr.vmem [resolvable:$true] %s37
      %43 = dma.hbm_to_vmem [thread:$0]  %s1, 128, %s38, [#allocation6], 64, 64, 4
    $region9: #{tpu_custom_call.1} parent=1 // pred_fallthru
      _
    // Predicated region
    $region10: #{tpu_custom_call.1} parent=1 // pred_check
      _
    $region11: #{tpu_custom_call.1} parent=1 // pred_check_branch
      %45 = sbr.rel (0) target = $region13
    $region12: #{tpu_custom_call.1} parent=1 // pred_region
      _
    $region13: #{tpu_custom_call.1} parent=1 // pred_fallthru
      _
    // Predicated region
    $region14: #{tpu_custom_call.1} parent=1 // pred_check
      _
    $region15: #{tpu_custom_call.1} parent=1 // pred_check_branch
      %47 = sbr.rel (0) target = $region17
    $region16: #{tpu_custom_call.1} parent=1 // pred_region
      %s49 = ssub.s32 32, 32
      %50 = vsyncadd [#allocation6], %s49
      %s51 = sshll.u32 [#allocation7], 4
      %s52 = int_to_ptr.vmem [resolvable:$true] %s51
      %57 = dma.hbm_to_vmem [thread:$0]  %s3, 32, %s52, [#allocation6], 16, 16, 1
    $region17: #{tpu_custom_call.1} parent=1 // pred_fallthru
      _
    // Predicated region
    $region18: #{tpu_custom_call.1} parent=1 // pred_check
      _
    $region19: #{tpu_custom_call.1} parent=1 // pred_check_branch
      %59 = sbr.rel (0) target = $region21
    $region20: #{tpu_custom_call.1} parent=1 // pred_region
      %s61 = ssub.s32 256, 256
      %62 = vsyncadd [#allocation9], %s61
      %s63 = sshll.u32 [#allocation8], 4
      %s64 = int_to_ptr.vmem [resolvable:$true] %s63
      %69 = dma.hbm_to_vmem [thread:$0]  %s4, 256, %s64, [#allocation9], 64, 64, 4
    $region21: #{tpu_custom_call.1} parent=1 // pred_fallthru
      _
    // Predicated region
    $region22: #{tpu_custom_call.1} parent=1 // pred_check
      _
    $region23: #{tpu_custom_call.1} parent=1 // pred_check_branch
      %71 = sbr.rel (0) target = $region25
    $region24: #{tpu_custom_call.1} parent=1 // pred_region
      _
    $region25: #{tpu_custom_call.1} parent=1 // pred_fallthru
      _
    // Predicated region
    $region26: #{tpu_custom_call.1} parent=1 // pred_check
      _
    $region27: #{tpu_custom_call.1} parent=1 // pred_check_branch
      %73 = sbr.rel (0) target = $region29
    $region28: #{tpu_custom_call.1} parent=1 // pred_region
      %s75 = ssub.s32 256, 256
      %76 = vsyncadd [#allocation9], %s75
      %s77 = sshll.u32 [#allocation10], 4
      %s78 = int_to_ptr.vmem [resolvable:$true] %s77
      %83 = dma.hbm_to_vmem [thread:$0]  %s6, 256, %s78, [#allocation9], 64, 64, 4
    $region29: #{tpu_custom_call.1} parent=1 // pred_fallthru
      _
    // Predicated region
    $region30: #{tpu_custom_call.1} parent=1 // pred_check
      _
    $region31: #{tpu_custom_call.1} parent=1 // pred_check_branch
      %85 = sbr.rel (0) target = $region33
    $region32: #{tpu_custom_call.1} parent=1 // pred_region
      %86 = dma.done [#allocation3], 64
    $region33: #{tpu_custom_call.1} parent=1 // pred_fallthru
      _
    // Predicated region
    $region34: #{tpu_custom_call.1} parent=1 // pred_check
      _
    $region35: #{tpu_custom_call.1} parent=1 // pred_check_branch
      %88 = sbr.rel (0) target = $region37
    $region36: #{tpu_custom_call.1} parent=1 // pred_region
      %89 = dma.done [#allocation6], 128
    $region37: #{tpu_custom_call.1} parent=1 // pred_fallthru
      _
    // Predicated region
    $region38: #{tpu_custom_call.1} parent=1 // pred_check
      _
    $region39: #{tpu_custom_call.1} parent=1 // pred_check_branch
      %91 = sbr.rel (0) target = $region41
    $region40: #{tpu_custom_call.1} parent=1 // pred_region
      %92 = dma.done [#allocation6], 32
    $region41: #{tpu_custom_call.1} parent=1 // pred_fallthru
      _
    // Predicated region
    $region42: #{tpu_custom_call.1} parent=1 // pred_check
      _
    $region43: #{tpu_custom_call.1} parent=1 // pred_check_branch
      %94 = sbr.rel (0) target = $region45
    $region44: #{tpu_custom_call.1} parent=1 // pred_region
      %95 = dma.done [#allocation9], 256
    $region45: #{tpu_custom_call.1} parent=1 // pred_fallthru
      _
    // Predicated region
    $region46: #{tpu_custom_call.1} parent=1 // pred_check
      _
    $region47: #{tpu_custom_call.1} parent=1 // pred_check_branch
      %97 = sbr.rel (0) target = $region49
    $region48: #{tpu_custom_call.1} parent=1 // pred_region
      %98 = dma.done [#allocation9], 256
    $region49: #{tpu_custom_call.1} parent=1 // pred_fallthru
      _
    %v100 = vld [vmem:[#allocation2] sm:$0x3]
    %v101 = vld [vmem:[#allocation2 + $0x2] sm:$0x3]
    %v102 = vld [vmem:[#allocation5] sm:$0xf]
    %v103 = vld [vmem:[#allocation5 + $0x4] sm:$0xf]
    %v104 = vld [vmem:[%s2] sm:$0x1]
    %v105 = vld [vmem:[%s2 + $0x1] sm:$0x1]
    %v106 = vld [vmem:[#allocation7] sm:$0x1]
    %v107 = vld [vmem:[#allocation7 + $0x1] sm:$0x1]
    %v108 = vld [vmem:[#allocation8] sm:$0xf]
    %v109 = vld [vmem:[#allocation8 + $0x4] sm:$0xf]
    %v110 = vld [vmem:[#allocation8 + $0x8] sm:$0xf]
    %v111 = vld [vmem:[#allocation8 + $0xc] sm:$0xf]
    %v114 = vcombine.low %v100, %v101
    %v116 = vunpack.c.l.s4 1983009808
    %v117 = vunpack.c.0.s8 %v116
    %v118 = vlaneseq
    %v119 = vshrl.u32 %v118, 7
    %v120 = vsub.s32 %v117, %v119
    %v121 = vrot.slane %v114, %v120
    %v126 = vunpack.c.l.b16 %v108
    %v127 = vunpack.c.l.b16 %v109
    %v128 = vunpack.c.l.b16 %v110
    %v129 = vunpack.c.l.b16 %v111
    %v130 = vpack.c.b16 %v127, %v126
    %v131 = vpack.c.b16 %v129, %v128
    %vm134 = vcmask 261120
    %v136 = vsel %vm134, %v121, 0
    %138 = vmatprep.subr.bf16.mxu0 0
    %139 = vmatpush1.bf16.msra.mxu0 %v130
    %140 = vmatprep.subr.bf16.mxu0 0
    %141 = vmatpush1.bf16.msra.mxu0 %v131
    %142 = vmatprep.subr.bf16.mxu0 0
    %143 = vmatpush1.bf16.msra.mxu0 0
    %144 = vmatprep.subr.bf16.mxu0 0
    %145 = vmatpush1.bf16.msra.mxu0 0
    %146 = vmatprep.subr.bf16.mxu0 0
    %147 = vmatpush1.bf16.msra.mxu0 0
    %148 = vmatprep.subr.bf16.mxu0 0
    %149 = vmatpush1.bf16.msra.mxu0 0
    %150 = vmatprep.subr.bf16.mxu0 0
    %151 = vmatpush1.bf16.msra.mxu0 0
    %152 = vmatprep.subr.bf16.mxu0 0
    %153 = vmatpush1.bf16.msra.mxu0 0
    %154 = vmatprep.subr.bf16.mxu0 0
    %155 = vmatpush1.bf16.msra.mxu0 0
    %156 = vmatprep.subr.bf16.mxu0 0
    %157 = vmatpush1.bf16.msra.mxu0 0
    %158 = vmatprep.subr.bf16.mxu0 0
    %159 = vmatpush1.bf16.msra.mxu0 0
    %160 = vmatprep.subr.bf16.mxu0 0
    %161 = vmatpush1.bf16.msra.mxu0 0
    %162 = vmatprep.subr.bf16.mxu0 0
    %163 = vmatpush1.bf16.msra.mxu0 0
    %164 = vmatprep.subr.bf16.mxu0 0
    %165 = vmatpush1.bf16.msra.mxu0 0
    %166 = vmatprep.subr.bf16.mxu0 0
    %167 = vmatpush1.bf16.msra.mxu0 0
    %168 = vmatprep.subr.bf16.mxu0 0
    %169 = vmatpush1.bf16.msra.mxu0 0
    %170 = vmatprep.mubr.bf16.mxu0 0
    %171 = vmatmul.mubr.bf16.gmra.mrb[0].mxu0 %v136
    %v172 = vpop.f32.mrb[0].mxu0
    %v173 = vadd.f32 0.0, %v172
    %v174 = vpop.f32.mrb[0].mxu0
    %v175 = vpop.f32.mrb[0].mxu0
    %v176 = vpop.f32.mrb[0].mxu0
    %177 = vdwg.mxu0
    %v178 = vpack.c.bf16 %v173, %v173
    %v181 = vunpack.c.l.s4 1983009808
    %v182 = vunpack.c.0.s8 %v181
    %v183 = vlaneseq
    %v184 = vshrl.u32 %v183, 7
    %v185 = vsub.s32 %v182, %v184
    %v186 = vrot.slane %v178, %v185
    %v187 = vcombine.high %v186, %v186
    %v189 = vsel %vm134, %v186, 0
    %v192 = vsel %vm134, %v102, 0
    %194 = vmatprep.subr.bf16.mxu0 0
    %195 = vmatpush1.bf16.xpose.msra.mxu0 %v192
    %196 = vmatprep.subr.bf16.mxu0 0
    %197 = vmatpush1.bf16.xpose.msra.mxu0 0
    %198 = vmatprep.subr.bf16.mxu0 0
    %199 = vmatpush1.bf16.xpose.msra.mxu0 0
    %200 = vmatprep.subr.bf16.mxu0 0
    %201 = vmatpush1.bf16.xpose.msra.mxu0 0
    %202 = vmatprep.subr.bf16.mxu0 0
    %203 = vmatpush1.bf16.xpose.msra.mxu0 0
    %204 = vmatprep.subr.bf16.mxu0 0
    %205 = vmatpush1.bf16.xpose.msra.mxu0 0
    %206 = vmatprep.subr.bf16.mxu0 0
    %207 = vmatpush1.bf16.xpose.msra.mxu0 0
    %208 = vmatprep.subr.bf16.mxu0 0
    %209 = vmatpush1.bf16.xpose.msra.mxu0 0
    %210 = vmatprep.subr.bf16.mxu0 0
    %211 = vmatpush1.bf16.xpose.msra.mxu0 0
    %212 = vmatprep.subr.bf16.mxu0 0
    %213 = vmatpush1.bf16.xpose.msra.mxu0 0
    %214 = vmatprep.subr.bf16.mxu0 0
    %215 = vmatpush1.bf16.xpose.msra.mxu0 0
    %216 = vmatprep.subr.bf16.mxu0 0
    %217 = vmatpush1.bf16.xpose.msra.mxu0 0
    %218 = vmatprep.subr.bf16.mxu0 0
    %219 = vmatpush1.bf16.xpose.msra.mxu0 0
    %220 = vmatprep.subr.bf16.mxu0 0
    %221 = vmatpush1.bf16.xpose.msra.mxu0 0
    %222 = vmatprep.subr.bf16.mxu0 0
    %223 = vmatpush1.bf16.xpose.msra.mxu0 0
    %224 = vmatprep.subr.bf16.mxu0 0
    %225 = vmatpush1.bf16.xpose.msra.mxu0 0
    %226 = vmatprep.mubr.bf16.mxu0 0
    %227 = vmatmul.mubr.bf16.gmra.mrb[0].mxu0 %v189
    %v228 = vpop.f32.mrb[0].mxu0
    %v229 = vadd.f32 0.0, %v228
    %v230 = vpop.f32.mrb[0].mxu0
    %v231 = vpop.f32.mrb[0].mxu0
    %v232 = vpop.f32.mrb[0].mxu0
    %233 = vdwg.mxu0
    %v235 = vsel %vm134, %v187, 0
    %v238 = vsel %vm134, %v103, 0
    %240 = vmatprep.subr.bf16.mxu0 0
    %241 = vmatpush1.bf16.xpose.msra.mxu0 %v238
    %242 = vmatprep.subr.bf16.mxu0 0
    %243 = vmatpush1.bf16.xpose.msra.mxu0 0
    %244 = vmatprep.subr.bf16.mxu0 0
    %245 = vmatpush1.bf16.xpose.msra.mxu0 0
    %246 = vmatprep.subr.bf16.mxu0 0
    %247 = vmatpush1.bf16.xpose.msra.mxu0 0
    %248 = vmatprep.subr.bf16.mxu0 0
    %249 = vmatpush1.bf16.xpose.msra.mxu0 0
    %250 = vmatprep.subr.bf16.mxu0 0
    %251 = vmatpush1.bf16.xpose.msra.mxu0 0
    %252 = vmatprep.subr.bf16.mxu0 0
    %253 = vmatpush1.bf16.xpose.msra.mxu0 0
    %254 = vmatprep.subr.bf16.mxu0 0
    %255 = vmatpush1.bf16.xpose.msra.mxu0 0
    %256 = vmatprep.subr.bf16.mxu0 0
    %257 = vmatpush1.bf16.xpose.msra.mxu0 0
    %258 = vmatprep.subr.bf16.mxu0 0
    %259 = vmatpush1.bf16.xpose.msra.mxu0 0
    %260 = vmatprep.subr.bf16.mxu0 0
    %261 = vmatpush1.bf16.xpose.msra.mxu0 0
    %262 = vmatprep.subr.bf16.mxu0 0
    %263 = vmatpush1.bf16.xpose.msra.mxu0 0
    %264 = vmatprep.subr.bf16.mxu0 0
    %265 = vmatpush1.bf16.xpose.msra.mxu0 0
    %266 = vmatprep.subr.bf16.mxu0 0
    %267 = vmatpush1.bf16.xpose.msra.mxu0 0
    %268 = vmatprep.subr.bf16.mxu0 0
    %269 = vmatpush1.bf16.xpose.msra.mxu0 0
    %270 = vmatprep.subr.bf16.mxu0 0
    %271 = vmatpush1.bf16.xpose.msra.mxu0 0
    %272 = vmatprep.mubr.bf16.mxu0 0
    %273 = vmatmul.mubr.bf16.gmra.mrb[0].mxu0 %v235
    %v274 = vpop.f32.mrb[0].mxu0
    %v275 = vadd.f32 0.0, %v274
    %v276 = vpop.f32.mrb[0].mxu0
    %v277 = vpop.f32.mrb[0].mxu0
    %v278 = vpop.f32.mrb[0].mxu0
    %279 = vdwg.mxu0
    %vm280 = vcmp.gt.f32.partialorder %v106, 0.0
    %vm281 = vcmp.gt.f32.partialorder %v107, 0.0
    %v282 = vsel %vm280, 1, 0
    %v283 = vsel %vm281, 1, 0
    %v284 = vlaneseq
    %v285 = vshrl.u32 %v284, 7
    %v286 = vsub.s32 0, %v285
    %v287 = vrot.slane %v282, %v286
    %v288 = vlaneseq
    %v289 = vshrl.u32 %v288, 7
    %v290 = vsub.s32 0, %v289
    %v291 = vrot.slane %v283, %v290
    %vm292 = vcmp.eq.s32.totalorder %v287, 1
    %vm293 = vcmp.eq.s32.totalorder %v291, 1
    %v294 = vsel %vm292, %v229, -inf
    %v295 = vsel %vm293, %v275, -inf
    %vm296 = vcmask 60416
    %v297 = vsel %vm296, %v294, -inf
    %298 = vmax.xlane.f32.xlu0 %v297
    %v299 = vpop.xlane.xlu0 %298
    %v300 = vsel %vm296, %v295, -inf
    %301 = vmax.xlane.f32.xlu0 %v300
    %v302 = vpop.xlane.xlu0 %301
    %v303 = vsub.f32 %v294, %v299
    %v304 = vsub.f32 %v295, %v302
    %v305 = vmul.f32 %v303, 1.442695
    %v306 = vpow.pop %v305
    %v307 = vmul.f32 %v304, 1.442695
    %v308 = vpow.pop %v307
    %v309 = vsel %vm296, %v306, 0.0
    %310 = vadd.xlane.f32.xlu0 %v309
    %v311 = vpop.xlane.xlu0 %310
    %v312 = vsel %vm296, %v308, 0.0
    %313 = vadd.xlane.f32.xlu0 %v312
    %v314 = vpop.xlane.xlu0 %313
    %v315 = vrcp.pop %v311
    %v316 = vrcp.pop %v314
    %v317 = vmul.f32 %v306, %v315
    %v318 = vmul.f32 %v308, %v316
    %v321 = vlaneseq
    %v322 = vshrl.u32 %v321, 7
    %v323 = vsub.s32 0, %v322
    %v324 = vrot.slane %v104, %v323
    %v325 = vlaneseq
    %v326 = vshrl.u32 %v325, 7
    %v327 = vsub.s32 0, %v326
    %v328 = vrot.slane %v105, %v327
    %v331 = vmul.f32 %v317, %v324
    %v332 = vmul.f32 %v318, %v328
    %v333 = vsel %vm296, %v331, 0.0
    %334 = vadd.xlane.f32.xlu0 %v333
    %v335 = vpop.xlane.xlu0 %334
    %v336 = vsel %vm296, %v332, 0.0
    %337 = vadd.xlane.f32.xlu0 %v336
    %v338 = vpop.xlane.xlu0 %337
    %v339 = vrcp.pop %v335
    %v340 = vrcp.pop %v338
    %v341 = vmul.f32 %v331, %v339
    %v342 = vmul.f32 %v332, %v340
    %v343 = vpack.c.bf16 %v341, %v341
    %v344 = vpack.c.bf16 %v342, %v342
    %vm345 = vcmask 64512
    %v347 = vsel %vm345, %v343, 0
    %vm349 = vcmask 1043456
    %v350 = vsel %vm349, %v102, 0
    %352 = vmatprep.subr.bf16.mxu0 0
    %353 = vmatpush1.bf16.msra.mxu0 %v350
    %354 = vmatprep.subr.bf16.mxu0 0
    %355 = vmatpush1.bf16.msra.mxu0 0
    %356 = vmatprep.subr.bf16.mxu0 0
    %357 = vmatpush1.bf16.msra.mxu0 0
    %358 = vmatprep.subr.bf16.mxu0 0
    %359 = vmatpush1.bf16.msra.mxu0 0
    %360 = vmatprep.subr.bf16.mxu0 0
    %361 = vmatpush1.bf16.msra.mxu0 0
    %362 = vmatprep.subr.bf16.mxu0 0
    %363 = vmatpush1.bf16.msra.mxu0 0
    %364 = vmatprep.subr.bf16.mxu0 0
    %365 = vmatpush1.bf16.msra.mxu0 0
    %366 = vmatprep.subr.bf16.mxu0 0
    %367 = vmatpush1.bf16.msra.mxu0 0
    %368 = vmatprep.subr.bf16.mxu0 0
    %369 = vmatpush1.bf16.msra.mxu0 0
    %370 = vmatprep.subr.bf16.mxu0 0
    %371 = vmatpush1.bf16.msra.mxu0 0
    %372 = vmatprep.subr.bf16.mxu0 0
    %373 = vmatpush1.bf16.msra.mxu0 0
    %374 = vmatprep.subr.bf16.mxu0 0
    %375 = vmatpush1.bf16.msra.mxu0 0
    %376 = vmatprep.subr.bf16.mxu0 0
    %377 = vmatpush1.bf16.msra.mxu0 0
    %378 = vmatprep.subr.bf16.mxu0 0
    %379 = vmatpush1.bf16.msra.mxu0 0
    %380 = vmatprep.subr.bf16.mxu0 0
    %381 = vmatpush1.bf16.msra.mxu0 0
    %382 = vmatprep.subr.bf16.mxu0 0
    %383 = vmatpush1.bf16.msra.mxu0 0
    %384 = vmatprep.mubr.bf16.mxu0 0
    %385 = vmatmul.mubr.bf16.gmra.mrb[0].mxu0 %v347
    %v386 = vpop.f32.mrb[0].mxu0
    %v387 = vadd.f32 0.0, %v386
    %v388 = vpop.f32.mrb[0].mxu0
    %v389 = vpop.f32.mrb[0].mxu0
    %v390 = vpop.f32.mrb[0].mxu0
    %391 = vdwg.mxu0
    %v393 = vsel %vm345, %v344, 0
    %v395 = vsel %vm349, %v103, 0
    %397 = vmatprep.subr.bf16.mxu0 0
    %398 = vmatpush1.bf16.msra.mxu0 %v395
    %399 = vmatprep.subr.bf16.mxu0 0
    %400 = vmatpush1.bf16.msra.mxu0 0
    %401 = vmatprep.subr.bf16.mxu0 0
    %402 = vmatpush1.bf16.msra.mxu0 0
    %403 = vmatprep.subr.bf16.mxu0 0
    %404 = vmatpush1.bf16.msra.mxu0 0
    %405 = vmatprep.subr.bf16.mxu0 0
    %406 = vmatpush1.bf16.msra.mxu0 0
    %407 = vmatprep.subr.bf16.mxu0 0
    %408 = vmatpush1.bf16.msra.mxu0 0
    %409 = vmatprep.subr.bf16.mxu0 0
    %410 = vmatpush1.bf16.msra.mxu0 0
    %411 = vmatprep.subr.bf16.mxu0 0
    %412 = vmatpush1.bf16.msra.mxu0 0
    %413 = vmatprep.subr.bf16.mxu0 0
    %414 = vmatpush1.bf16.msra.mxu0 0
    %415 = vmatprep.subr.bf16.mxu0 0
    %416 = vmatpush1.bf16.msra.mxu0 0
    %417 = vmatprep.subr.bf16.mxu0 0
    %418 = vmatpush1.bf16.msra.mxu0 0
    %419 = vmatprep.subr.bf16.mxu0 0
    %420 = vmatpush1.bf16.msra.mxu0 0
    %421 = vmatprep.subr.bf16.mxu0 0
    %422 = vmatpush1.bf16.msra.mxu0 0
    %423 = vmatprep.subr.bf16.mxu0 0
    %424 = vmatpush1.bf16.msra.mxu0 0
    %425 = vmatprep.subr.bf16.mxu0 0
    %426 = vmatpush1.bf16.msra.mxu0 0
    %427 = vmatprep.subr.bf16.mxu0 0
    %428 = vmatpush1.bf16.msra.mxu0 0
    %429 = vmatprep.mubr.bf16.mxu0 0
    %430 = vmatmul.mubr.bf16.gmra.mrb[0].mxu0 %v393
    %v431 = vpop.f32.mrb[0].mxu0
    %v432 = vadd.f32 0.0, %v431
    %v433 = vpop.f32.mrb[0].mxu0
    %v434 = vpop.f32.mrb[0].mxu0
    %v435 = vpop.f32.mrb[0].mxu0
    %436 = vdwg.mxu0
    %v437 = vpack.c.bf16 %v387, %v387
    %v438 = vpack.c.bf16 %v432, %v432
    %v439 = vld [vmem:[%s5] sm:$0xf]
    %v440 = vld [vmem:[%s5 + $0x4] sm:$0xf]
    %v441 = vld [vmem:[%s5 + $0x8] sm:$0xf]
    %v442 = vld [vmem:[%s5 + $0xc] sm:$0xf]
    %v443 = vld [vmem:[#allocation10] sm:$0xf]
    %v444 = vld [vmem:[#allocation10 + $0x4] sm:$0xf]
    %v445 = vld [vmem:[#allocation10 + $0x8] sm:$0xf]
    %v446 = vld [vmem:[#allocation10 + $0xc] sm:$0xf]
    %v451 = vunpack.c.l.b16 %v443
    %v452 = vunpack.c.l.b16 %v444
    %v453 = vunpack.c.l.b16 %v445
    %v454 = vunpack.c.l.b16 %v446
    %v455 = vpack.c.b16 %v452, %v451
    %v456 = vpack.c.b16 %v454, %v453
    %459 = vmatprep.subr.bf16.mxu0 0
    %460 = vmatpush1.bf16.msra.mxu0 %v455
    %461 = vmatprep.subr.bf16.mxu0 0
    %462 = vmatpush1.bf16.msra.mxu0 %v456
    %463 = vmatprep.subr.bf16.mxu0 0
    %464 = vmatpush1.bf16.msra.mxu0 0
    %465 = vmatprep.subr.bf16.mxu0 0
    %466 = vmatpush1.bf16.msra.mxu0 0
    %467 = vmatprep.subr.bf16.mxu0 0
    %468 = vmatpush1.bf16.msra.mxu0 0
    %469 = vmatprep.subr.bf16.mxu0 0
    %470 = vmatpush1.bf16.msra.mxu0 0
    %471 = vmatprep.subr.bf16.mxu0 0
    %472 = vmatpush1.bf16.msra.mxu0 0
    %473 = vmatprep.subr.bf16.mxu0 0
    %474 = vmatpush1.bf16.msra.mxu0 0
    %475 = vmatprep.subr.bf16.mxu0 0
    %476 = vmatpush1.bf16.msra.mxu0 0
    %477 = vmatprep.subr.bf16.mxu0 0
    %478 = vmatpush1.bf16.msra.mxu0 0
    %479 = vmatprep.subr.bf16.mxu0 0
    %480 = vmatpush1.bf16.msra.mxu0 0
    %481 = vmatprep.subr.bf16.mxu0 0
    %482 = vmatpush1.bf16.msra.mxu0 0
    %483 = vmatprep.subr.bf16.mxu0 0
    %484 = vmatpush1.bf16.msra.mxu0 0
    %485 = vmatprep.subr.bf16.mxu0 0
    %486 = vmatpush1.bf16.msra.mxu0 0
    %487 = vmatprep.subr.bf16.mxu0 0
    %488 = vmatpush1.bf16.msra.mxu0 0
    %489 = vmatprep.subr.bf16.mxu0 0
    %490 = vmatpush1.bf16.msra.mxu0 0
    %491 = vmatprep.mubr.bf16.mxu0 0
    %492 = vmatmul.mubr.bf16.gmra.mrb[0].mxu0 %v136
    %v493 = vpop.f32.mrb[0].mxu0
    %v494 = vadd.f32 0.0, %v493
    %v495 = vpop.f32.mrb[0].mxu0
    %v496 = vpop.f32.mrb[0].mxu0
    %v497 = vpop.f32.mrb[0].mxu0
    %498 = vdwg.mxu0
    %v501 = vcombine.low %v437, %v438
    %v503 = vunpack.c.l.s4 1983009808
    %v504 = vunpack.c.0.s8 %v503
    %v505 = vlaneseq
    %v506 = vshrl.u32 %v505, 7
    %v507 = vsub.s32 %v504, %v506
    %v508 = vrot.slane %v501, %v507
    %v513 = vunpack.c.l.b16 %v439
    %v514 = vunpack.c.l.b16 %v440
    %v515 = vunpack.c.l.b16 %v441
    %v516 = vunpack.c.l.b16 %v442
    %v517 = vpack.c.b16 %v514, %v513
    %v518 = vpack.c.b16 %v516, %v515
    %v522 = vsel %vm134, %v508, 0
    %524 = vmatprep.subr.bf16.mxu0 0
    %525 = vmatpush1.bf16.msra.mxu0 %v517
    %526 = vmatprep.subr.bf16.mxu0 0
    %527 = vmatpush1.bf16.msra.mxu0 %v518
    %528 = vmatprep.subr.bf16.mxu0 0
    %529 = vmatpush1.bf16.msra.mxu0 0
    %530 = vmatprep.subr.bf16.mxu0 0
    %531 = vmatpush1.bf16.msra.mxu0 0
    %532 = vmatprep.subr.bf16.mxu0 0
    %533 = vmatpush1.bf16.msra.mxu0 0
    %534 = vmatprep.subr.bf16.mxu0 0
    %535 = vmatpush1.bf16.msra.mxu0 0
    %536 = vmatprep.subr.bf16.mxu0 0
    %537 = vmatpush1.bf16.msra.mxu0 0
    %538 = vmatprep.subr.bf16.mxu0 0
    %539 = vmatpush1.bf16.msra.mxu0 0
    %540 = vmatprep.subr.bf16.mxu0 0
    %541 = vmatpush1.bf16.msra.mxu0 0
    %542 = vmatprep.subr.bf16.mxu0 0
    %543 = vmatpush1.bf16.msra.mxu0 0
    %544 = vmatprep.subr.bf16.mxu0 0
    %545 = vmatpush1.bf16.msra.mxu0 0
    %546 = vmatprep.subr.bf16.mxu0 0
    %547 = vmatpush1.bf16.msra.mxu0 0
    %548 = vmatprep.subr.bf16.mxu0 0
    %549 = vmatpush1.bf16.msra.mxu0 0
    %550 = vmatprep.subr.bf16.mxu0 0
    %551 = vmatpush1.bf16.msra.mxu0 0
    %552 = vmatprep.subr.bf16.mxu0 0
    %553 = vmatpush1.bf16.msra.mxu0 0
    %554 = vmatprep.subr.bf16.mxu0 0
    %555 = vmatpush1.bf16.msra.mxu0 0
    %556 = vmatprep.mubr.bf16.mxu0 0
    %557 = vmatmul.mubr.bf16.gmra.mrb[0].mxu0 %v522
    %v558 = vpop.f32.mrb[0].mxu0
    %v559 = vadd.f32 %v494, %v558
    %v560 = vpop.f32.mrb[0].mxu0
    %v561 = vpop.f32.mrb[0].mxu0
    %v562 = vpop.f32.mrb[0].mxu0
    %563 = vdwg.mxu0
    %v564 = vtanh.pop %v559
    %v566 = vcombine.high %v564, %v564
    %vm568 = vcmask 257024
    %569 = vst.msk [vmem:[#allocation11] sm:$0xf] %vm568, %v564
    %570 = vst.msk [vmem:[#allocation11 + $0x4] sm:$0xf] %vm568, %v566
    %571 = vst.msk [vmem:[#allocation12] sm:$0xf] %vm296, %v341
    %572 = vst.msk [vmem:[#allocation12 + $0x4] sm:$0xf] %vm296, %v342
    %573 = vst.msk [vmem:[#allocation14] sm:$0xf] %vm296, %v317
    %574 = vst.msk [vmem:[#allocation14 + $0x4] sm:$0xf] %vm296, %v318
    // Predicated region
    $region50: #{tpu_custom_call.1} parent=1 // pred_check
      _
    $region51: #{tpu_custom_call.1} parent=1 // pred_check_branch
      %576 = sbr.rel (0) target = $region53
    $region52: #{tpu_custom_call.1} parent=1 // pred_region
      %s578 = ssub.s32 128, 128
      %579 = vsyncadd [#allocation4], %s578
      %s580 = sshll.u32 [#allocation11], 4
      %s581 = int_to_ptr.vmem [resolvable:$true] %s580
      %586 = dma.vmem_to_hbm [thread:$0]  %s581, 128, %s7, [#allocation4], 64, 64, 4
    $region53: #{tpu_custom_call.1} parent=1 // pred_fallthru
      _
    // Predicated region
    $region54: #{tpu_custom_call.1} parent=1 // pred_check
      _
    $region55: #{tpu_custom_call.1} parent=1 // pred_check_branch
      %588 = sbr.rel (0) target = $region57
    $region56: #{tpu_custom_call.1} parent=1 // pred_region
      %s590 = ssub.s32 128, 128
      %591 = vsyncadd [#allocation13], %s590
      %s592 = sshll.u32 [#allocation12], 4
      %s593 = int_to_ptr.vmem [resolvable:$true] %s592
      %598 = dma.vmem_to_hbm [thread:$0]  %s593, 128, %s8, [#allocation13], 64, 64, 4
    $region57: #{tpu_custom_call.1} parent=1 // pred_fallthru
      _
    // Predicated region
    $region58: #{tpu_custom_call.1} parent=1 // pred_check
      _
    $region59: #{tpu_custom_call.1} parent=1 // pred_check_branch
      %600 = sbr.rel (0) target = $region61
    $region60: #{tpu_custom_call.1} parent=1 // pred_region
      %s602 = ssub.s32 128, 128
      %603 = vsyncadd [#allocation13], %s602
      %s604 = sshll.u32 [#allocation14], 4
      %s605 = int_to_ptr.vmem [resolvable:$true] %s604
      %610 = dma.vmem_to_hbm [thread:$0]  %s605, 128, %s9, [#allocation13], 64, 64, 4
    $region61: #{tpu_custom_call.1} parent=1 // pred_fallthru
      _
    // Predicated region
    $region62: #{tpu_custom_call.1} parent=1 // pred_check
      _
    $region63: #{tpu_custom_call.1} parent=1 // pred_check_branch
      %612 = sbr.rel (0) target = $region65
    $region64: #{tpu_custom_call.1} parent=1 // pred_region
      %613 = dma.done [#allocation4], 128
    $region65: #{tpu_custom_call.1} parent=1 // pred_fallthru
      _
    // Predicated region
    $region66: #{tpu_custom_call.1} parent=1 // pred_check
      _
    $region67: #{tpu_custom_call.1} parent=1 // pred_check_branch
      %615 = sbr.rel (0) target = $region69
    $region68: #{tpu_custom_call.1} parent=1 // pred_region
      %616 = dma.done [#allocation13], 128
    $region69: #{tpu_custom_call.1} parent=1 // pred_fallthru
      _
    // Predicated region
    $region70: #{tpu_custom_call.1} parent=1 // pred_check
      _
    $region71: #{tpu_custom_call.1} parent=1 // pred_check_branch
      %618 = sbr.rel (0) target = $region73
    $region72: #{tpu_custom_call.1} parent=1 // pred_region
      %619 = dma.done [#allocation13], 128
    $region73: #{tpu_custom_call.1} parent=1 // pred_fallthru
      _
    %620 = vsyncpa [#allocation3], 1
    %621 = vsyncpa [#allocation6], 1
    %622 = vsyncpa [#allocation9], 1
    %623 = vsyncpa [#allocation4], 1
    %624 = vsyncpa [#allocation13], 1

</llo_original>
